<compile_context>
chip_gen: v5e
topology: v5e:2x2
jax: 0.10.0
libtpu: 0.0.40
codegen_flags: <defaults>
</compile_context>

<pallas_src>
import functools
import math

import jax
import jax.numpy as jnp
from jax.experimental import pallas as pl
from jax.experimental.pallas import tpu as pltpu


def _round_up(x, m):
    return (x + m - 1) // m * m


def _tcn_kernel(x_ref, w_ref, scale_ref, shift_ref, o_ref, *, NG, TG, T_dense):
    # x_ref    : (T_pack, TM, Cpi)   bf16   tap-group-packed, channels-last, T leading
    # w_ref    : (NG, Cpi, Cpo)      bf16   packed per-group weights
    # scale_ref: (1, Cpo)            f32    gamma / sqrt(var + eps)
    # shift_ref: (1, Cpo)            f32    (conv_bias - running_mean) * scale + beta
    # o_ref    : (T_dense, TM, Cpo)  bf16
    TM = x_ref.shape[1]
    Cpi = x_ref.shape[2]
    Cpo = o_ref.shape[2]

    acc = None
    for g in range(NG):  # static unrolled loop over tap groups
        # leading-(non-vreg)-dim row selection: no sublane shift, clean vlds
        xs = x_ref[pl.ds(g * TG, T_dense)]                 # (T_dense, TM, Cpi)
        lhs = xs.reshape(T_dense * TM, Cpi)                # layout-preserving merge (TM % 8 == 0)
        contrib = jnp.dot(lhs, w_ref[g],
                          preferred_element_type=jnp.float32)
        acc = contrib if acc is None else acc + contrib

    out = acc * scale_ref[...] + shift_ref[...]            # f32 affine epilogue
    o_ref[...] = out.reshape(T_dense, TM, Cpo).astype(o_ref.dtype)


def tcn_unit_forward(x, conv_w, conv_b, gamma, beta, running_mean, running_var,
                     *, stride=1, pad=True, eps=1e-5):
    """Forward of TCNUnit: Conv2d(kernel=(K,1), pad=((K-1)//2,0), stride=(s,1)) + BatchNorm2d (eval)."""
    N, Cin, T, V = x.shape
    Cout, _, K, _ = conv_w.shape
    padding = (K - 1) // 2 if pad else 0
    T_dense = T + 2 * padding - (K - 1)                    # dense (stride-1) output length
    T_out = (T + 2 * padding - K) // stride + 1            # final (strided) output length
    assert T_dense >= 1

    # ---- tap-group contraction packing -------------------------------------------------------
    # Pack TG consecutive taps along the contraction so each matmul contracts a (near-)dense
    # 128-lane block (instead of Cin zero-padded to 128).  NG = number of tap groups.
    TG = min(K, max(1, 128 // Cin)) if Cin < 128 else 1
    NG = -(-K // TG)
    extra_t = NG * TG - K                                  # extra right zero-pad so the last group
    Cg = TG * Cin                                          #   (whose tail taps have zero weights)
    Cpi = _round_up(Cg, 128)                               #   never reads past the slab
    Cpo = _round_up(Cout, 128)
    M = N * V
    T_pad = T + 2 * padding + extra_t
    T_pack = T_pad - TG + 1                                # = T_dense + (NG - 1) * TG

    # ---- per-generation VMEM budget -> M tile size --------------------------------------------
    try:
        vmem_cap = int(pltpu.get_tpu_info().vmem_capacity_bytes)
    except Exception:
        vmem_cap = 64 * 1024 * 1024                        # v7x per-TC physical = safe floor
    vmem_limit = min(int(vmem_cap * 0.85), 100 * 1024 * 1024)
    budget = int(vmem_cap * 0.70)

    const_bytes = 2 * (NG * Cpi * Cpo * 2) + 2 * (2 * Cpo * 4)        # dbuf weights + scale/shift
    bytes_per_m = 2 * (T_pack * Cpi * 2) + 2 * (T_dense * Cpo * 2)    # dbuf bf16 in + bf16 out
    TM = max(8, min(2048, max(0, budget - const_bytes) // max(1, bytes_per_m) // 8 * 8))
    if M > 8:
        # keep >= 2 grid steps so ("parallel",) can shard across v7x's 2 TensorCores
        TM = min(TM, _round_up(-(-M // 2), 8))
    TM = min(TM, _round_up(M, 8))
    M_pad = _round_up(M, TM)

    # ---- wrapper glue: bf16 cast first, T-leading slab, mini im2col, padding ------------------
    xb = x.astype(jnp.bfloat16)                                        # halve transpose/pad bytes
    xr = jnp.transpose(xb, (2, 0, 3, 1)).reshape(T, M, Cin)            # (T, M, Cin), T leading
    xr = jnp.pad(xr, ((padding, padding + extra_t), (0, 0), (0, 0)))   # (T_pad, M, Cin)
    if TG > 1:
        slab = jnp.concatenate([xr[j:j + T_pack] for j in range(TG)], axis=-1)   # (T_pack, M, TG*Cin)
    else:
        slab = xr                                                                 # (T_pack, M, Cin)
    slab = jnp.pad(slab, ((0, 0), (0, M_pad - M), (0, Cpi - Cg)))      # (T_pack, M_pad, Cpi)

    wk = jnp.transpose(conv_w[..., 0], (2, 1, 0)).astype(jnp.bfloat16)  # (K, Cin, Cout)
    wk = jnp.pad(wk, ((0, extra_t), (0, 0), (0, 0)))                    # (NG*TG, Cin, Cout)
    wg = wk.reshape(NG, TG * Cin, Cout)                                 # group-packed weights
    wg = jnp.pad(wg, ((0, 0), (0, Cpi - Cg), (0, Cpo - Cout)))          # (NG, Cpi, Cpo)

    scale = (gamma / jnp.sqrt(running_var + eps)).astype(jnp.float32)              # (Cout,)
    shift = ((conv_b - running_mean) * scale + beta).astype(jnp.float32)            # (Cout,)
    scale = jnp.pad(scale, (0, Cpo - Cout)).reshape(1, Cpo)
    shift = jnp.pad(shift, (0, Cpo - Cout)).reshape(1, Cpo)

    kernel = functools.partial(_tcn_kernel, NG=NG, TG=TG, T_dense=T_dense)

    out = pl.pallas_call(
        kernel,
        out_shape=jax.ShapeDtypeStruct((T_dense, M_pad, Cpo), jnp.bfloat16),
        grid_spec=pltpu.PrefetchScalarGridSpec(
            num_scalar_prefetch=0,
            grid=(M_pad // TM,),
            in_specs=[
                pl.BlockSpec((T_pack, TM, Cpi), lambda i: (0, i, 0)),
                # constant-index blocks: re-DMA is skipped across grid steps
                pl.BlockSpec((NG, Cpi, Cpo), lambda i: (0, 0, 0)),
                pl.BlockSpec((1, Cpo), lambda i: (0, 0)),
                pl.BlockSpec((1, Cpo), lambda i: (0, 0)),
            ],
            out_specs=pl.BlockSpec((T_dense, TM, Cpo), lambda i: (0, i, 0)),
        ),
        compiler_params=pltpu.CompilerParams(
            dimension_semantics=("parallel",),      # shards M tiles across v7x's 2 TensorCores
            vmem_limit_bytes=vmem_limit,
        ),
    )(slab, wg, scale, shift)

    # drop padding, apply temporal stride, back to NCHW (transpose done on bf16, upcast last)
    out = out[::stride, :M, :Cout]                                     # (T_out, M, Cout)
    out = out.reshape(T_out, N, V, Cout)
    return jnp.transpose(out, (1, 3, 0, 2)).astype(jnp.float32)        # (N, Cout, T_out, V)


def _reference_forward(x, conv_w, conv_b, gamma, beta, rmean, rvar,
                       *, stride=1, pad=True, eps=1e-5):
    """Pure-JAX reference (lax conv, f32) for correctness checking."""
    K = conv_w.shape[2]
    padding = (K - 1) // 2 if pad else 0
    y = jax.lax.conv_general_dilated(
        x, conv_w,
        window_strides=(stride, 1),
        padding=((padding, padding), (0, 0)),
        dimension_numbers=("NCHW", "OIHW", "NCHW"),
    ) + conv_b.reshape(1, -1, 1, 1)
    s = (gamma / jnp.sqrt(rvar + eps)).reshape(1, -1, 1, 1)
    return (y - rmean.reshape(1, -1, 1, 1)) * s + beta.reshape(1, -1, 1, 1)


if __name__ == "__main__":
    # small shapes implied by the module: N, Cin, T (temporal), V (vertices)
    N, Cin, Cout, T, V, K = 2, 4, 8, 16, 16, 9
    stride, pad = 1, True

    key = jax.random.PRNGKey(0)
    kx, kw = jax.random.split(key)

    x = jax.random.normal(kx, (N, Cin, T, V), dtype=jnp.float32)

    # conv_init: kaiming-style normal weights, zero bias (deterministic here)
    fan_out = Cout * K * 1
    std = math.sqrt(2.0 / fan_out)
    conv_w = std * jax.random.normal(kw, (Cout, Cin, K, 1), dtype=jnp.float32)
    conv_b = jnp.zeros((Cout,), dtype=jnp.float32)

    # bn_init(bn, 1): gamma=1, beta=0; fresh running stats: mean=0, var=1 (eval-mode BN)
    gamma = jnp.ones((Cout,), dtype=jnp.float32)
    beta = jnp.zeros((Cout,), dtype=jnp.float32)
    running_mean = jnp.zeros((Cout,), dtype=jnp.float32)
    running_var = jnp.ones((Cout,), dtype=jnp.float32)

    out = tcn_unit_forward(x, conv_w, conv_b, gamma, beta, running_mean, running_var,
                           stride=stride, pad=pad)
    out = jax.block_until_ready(out)

    ref = _reference_forward(x, conv_w, conv_b, gamma, beta, running_mean, running_var,
                             stride=stride, pad=pad)
    assert out.shape == ref.shape, (out.shape, ref.shape)
    # bf16 MXU operands + bf16 output store vs an f32 lax.conv reference -> loosened tolerance
    assert jnp.max(jnp.abs(out - ref)) < 8e-2, float(jnp.max(jnp.abs(out - ref)))

    print("KERNEL_OK")
</pallas_src>

<mosaic_0001>
module attributes {stable_mosaic.version = 11 : i64} {
  func.func @_tcn_kernel(%arg0: i32, %arg1: memref<16x16x128xbf16, #tpu.memory_space<vmem>>, %arg2: memref<1x128x128xbf16, #tpu.memory_space<vmem>>, %arg3: memref<1x128xf32, #tpu.memory_space<vmem>>, %arg4: memref<1x128xf32, #tpu.memory_space<vmem>>, %arg5: memref<16x16x128xbf16, #tpu.memory_space<vmem>>) attributes {dimension_semantics = [#tpu.dimension_semantics<parallel>], iteration_bounds = array<i64: 2>, scalar_prefetch = 0 : i64, scratch_operands = 0 : i64, tpu.core_type = #tpu.core_type<tc>, window_params = [{transform_indices = @transform_0, window_bounds = array<i64: 16, 16, 128>}, {pipeline_mode = #tpu.pipeline_mode<synchronous>, transform_indices = @transform_1, window_bounds = array<i64: 1, 128, 128>}, {pipeline_mode = #tpu.pipeline_mode<synchronous>, transform_indices = @transform_2, window_bounds = array<i64: 1, 128>}, {pipeline_mode = #tpu.pipeline_mode<synchronous>, transform_indices = @transform_3, window_bounds = array<i64: 1, 128>}, {transform_indices = @transform_4, window_bounds = array<i64: 16, 16, 128>}]} {
    %c0 = arith.constant 0 : index
    %c0_0 = arith.constant 0 : index
    %c0_1 = arith.constant 0 : index
    %0 = vector.load %arg1[%c0, %c0_0, %c0_1] : memref<16x16x128xbf16, #tpu.memory_space<vmem>>, vector<16x16x128xbf16>
    %1 = vector.shape_cast %0 : vector<16x16x128xbf16> to vector<256x128xbf16>
    %c0_2 = arith.constant 0 : index
    %c0_3 = arith.constant 0 : index
    %c0_4 = arith.constant 0 : index
    %2 = vector.load %arg2[%c0_2, %c0_3, %c0_4] : memref<1x128x128xbf16, #tpu.memory_space<vmem>>, vector<1x128x128xbf16>
    %3 = vector.shape_cast %2 : vector<1x128x128xbf16> to vector<128x128xbf16>
    %cst = arith.constant dense<0.000000e+00> : vector<256x128xf32>
    %4 = tpu.matmul %1, %3, %cst {dimension_numbers = #tpu.dot_dimension_numbers<[1], [0], [0], [1], [0, 0, 1, 1], [], []>} : vector<256x128xbf16>, vector<128x128xbf16>, vector<256x128xf32> -> vector<256x128xf32>
    %c0_5 = arith.constant 0 : index
    %c0_6 = arith.constant 0 : index
    %5 = vector.load %arg3[%c0_5, %c0_6] : memref<1x128xf32, #tpu.memory_space<vmem>>, vector<1x128xf32>
    %6 = vector.broadcast %5 : vector<1x128xf32> to vector<256x128xf32>
    %7 = arith.mulf %4, %6 : vector<256x128xf32>
    %c0_7 = arith.constant 0 : index
    %c0_8 = arith.constant 0 : index
    %8 = vector.load %arg4[%c0_7, %c0_8] : memref<1x128xf32, #tpu.memory_space<vmem>>, vector<1x128xf32>
    %9 = vector.broadcast %8 : vector<1x128xf32> to vector<256x128xf32>
    %10 = arith.addf %7, %9 : vector<256x128xf32>
    %11 = vector.shape_cast %10 : vector<256x128xf32> to vector<16x16x128xf32>
    %12 = arith.truncf %11 : vector<16x16x128xf32> to vector<16x16x128xbf16>
    %c0_9 = arith.constant 0 : index
    %c0_10 = arith.constant 0 : index
    %c0_11 = arith.constant 0 : index
    %13 = vector.load %arg5[%c0_9, %c0_10, %c0_11] : memref<16x16x128xbf16, #tpu.memory_space<vmem>>, vector<16x16x128xbf16>
    tpu.vector_store %arg5[%c0_9, %c0_10, %c0_11], %12 {strides = array<i32>} : memref<16x16x128xbf16, #tpu.memory_space<vmem>>, vector<16x16x128xbf16>,
    return
  }
  func.func @transform_0(%arg0: i32) -> (i32, i32, i32) {
    %c0_i32 = arith.constant 0 : i32
    %c0_i32_0 = arith.constant 0 : i32
    %c0_i32_1 = arith.constant 0 : i32
    return %c0_i32, %arg0, %c0_i32_0 : i32, i32, i32
  }
  func.func @transform_1(%arg0: i32) -> (i32, i32, i32) {
    %c0_i32 = arith.constant 0 : i32
    %c0_i32_0 = arith.constant 0 : i32
    %c0_i32_1 = arith.constant 0 : i32
    %c0_i32_2 = arith.constant 0 : i32
    return %c0_i32, %c0_i32_0, %c0_i32_1 : i32, i32, i32
  }
  func.func @transform_2(%arg0: i32) -> (i32, i32) {
    %c0_i32 = arith.constant 0 : i32
    %c0_i32_0 = arith.constant 0 : i32
    %c0_i32_1 = arith.constant 0 : i32
    return %c0_i32, %c0_i32_0 : i32, i32
  }
  func.func @transform_3(%arg0: i32) -> (i32, i32) {
    %c0_i32 = arith.constant 0 : i32
    %c0_i32_0 = arith.constant 0 : i32
    %c0_i32_1 = arith.constant 0 : i32
    return %c0_i32, %c0_i32_0 : i32, i32
  }
  func.func @transform_4(%arg0: i32) -> (i32, i32, i32) {
    %c0_i32 = arith.constant 0 : i32
    %c0_i32_0 = arith.constant 0 : i32
    %c0_i32_1 = arith.constant 0 : i32
    return %c0_i32, %arg0, %c0_i32_0 : i32, i32, i32
  }
}

</mosaic_0001>

<llo_original>
// kernel: tpu_custom_call.1
$region0: #{tpu_custom_call.1}
  #allocation0 [shape = 'u32[]', space=smem, size = 0x4, offset = 0x4, fixed_abs, tag = 'smem constant byte address 0x4 - core index']
  #allocation1 [shape = 'u32[72,128]{1,0:T(1,128)}', space=vmem, size = 0x9000, scoped, tag = 'internal scratch']
  #allocation8 [shape = 's32[]', space=sflag, size = 0x4, offset = 0, fixed_abs, tag = 'sflag constant byte address 0x0 - dummy sync flag']
  #allocation10 [shape = 's32[]', space=sflag, size = 0x4, offset = 0, fixed_abs, tag = 'sflag constant byte address 0x0 - dummy sync flag']
  %s0 = inlined_call_operand.hbm [shape: bf16[16,32,128], index: 0, kind: input, shape index: {}]
  %s1 = inlined_call_operand.hbm [shape: bf16[1,128,128], index: 1, kind: input, shape index: {}]
  %s2 = inlined_call_operand.vmem [shape: f32[1,128], index: 2, kind: input, shape index: {}]
  %s3 = inlined_call_operand.vmem [shape: f32[1,128], index: 3, kind: input, shape index: {}]
  %s4 = inlined_call_operand.hbm [shape: bf16[16,32,128], index: 4, kind: output, shape index: {}]
  %s5 = sld [smem:[#allocation0]]
  $region57: #{tpu_custom_call.1} parent=0
    _
  %s7 = ssub.s32 1, %s5
  %s8 = scalar_select 0, %s7, %s5
  $region1: #{tpu_custom_call.1} parent=0
    #allocation2 [shape = 'u8[131072]{0}', space=vmem, size = 0x20000, scoped, tag = 'input window, operand 0']
    #allocation3 [shape = 's32[2]{0}', space=sflag, size = 0x8, scoped, tag = 'scoped memory for tpu_custom_call.1']
    #allocation4 [shape = 's32[2]{0}', space=sflag, size = 0x8, scoped, tag = 'scoped memory for tpu_custom_call.1']
    #allocation5 [shape = 'u8[32768]{0}', space=vmem, size = 0x8000, scoped, tag = 'input window, operand 1, single buffered']
    #allocation6 [shape = 's32[1]{0}', space=sflag, size = 0x4, scoped, tag = 'scoped memory for tpu_custom_call.1']
    #allocation7 [shape = 'u8[131072]{0}', space=vmem, size = 0x20000, scoped, tag = 'output window, operand 0']
    %9 = vsyncpa [#allocation3], 0
    %s10 = scalar_lea.sflag [#allocation3], 1
    %11 = vsyncpa %s10, 0
    %12 = vsyncpa [#allocation6], 0
    %13 = vsyncpa [#allocation4], 0
    %s14 = scalar_lea.sflag [#allocation4], 1
    %15 = vsyncpa %s14, 0
    loop: start=0, step=1, limit=4
    $region2: #{tpu_custom_call.1} parent=1 // loop_pre_header
      _
    $region3: #{tpu_custom_call.1} parent=1 // loop_header
      %s17 = sphi 0, %s21
      %p18 = scmp.ge.s32.totalorder %s17, 4
      %s27 = sphi 0, %s29
      %s30 = sphi 0, %s27
      %s31 = sphi 0, %s30
      %s47 = sphi 0, %s31
      %s51 = sphi 0, %s51
      %s53 = sphi 0, %s51
      %s54 = sphi 0, %s53
      %s68 = sphi 0, %s54
      %s72 = sphi 0, %s72
      %s74 = sphi 0, %s72
      %s75 = sphi 0, %s74
      %s89 = sphi 0, %s75
      %s93 = sphi 0, %s93
      %s95 = sphi 0, %s93
      %s96 = sphi 0, %s95
      %s110 = sphi 0, %s96
      %s116 = sphi 0, %s118
      %s119 = sphi 0, %s116
      %s120 = sphi 0, %s119
      %s136 = sphi 0, %s120
    $region4: #{tpu_custom_call.1} parent=1 // loop_header_branch
      %20 = sbr.rel (%p18) target = $region8
    $region5: #{tpu_custom_call.1} parent=1 // loop_body
      %s22 = ssub.s32 %s17, 1
      %s23 = ssub.s32 %s17, 2
      %s24 = sadd.s32 %s17, 1
      %s25 = ssub.s32 %s17, %s24
      %p26 = scmp.eq.s32.totalorder %s25, 0
      %s28 = sadd.s32 %s27, 1
      %s29 = scalar_select %p26, %s27, %s28
      %p32 = pneg %p26
      %p33 = scmp.eq.s32.totalorder %s17, 1
      %p34 = por %p32, %p33
      %p35 = scmp.ne.s32.totalorder %s27, %s30
      %p36 = scmp.eq.s32.totalorder %s17, 0
      %p37 = por %p35, %p36
      %p38 = scmp.ne.s32.totalorder %s27, %s30
      %p39 = scmp.eq.s32.totalorder %s22, 1
      %p40 = por %p38, %p39
      %p41 = scmp.ne.s32.totalorder %s30, %s31
      %p42 = scmp.eq.s32.totalorder %s22, 0
      %p43 = por %p41, %p42
      %p44 = scmp.ne.s32.totalorder %s30, %s31
      %p45 = scmp.eq.s32.totalorder %s23, 1
      %p46 = por %p44, %p45
      %p48 = scmp.ne.s32.totalorder %s31, %s47
      %p49 = scmp.eq.s32.totalorder %s23, 0
      %p50 = por %p48, %p49
      %s52 = sadd.s32 %s51, 1
      %p55 = scmp.eq.s32.totalorder %s17, 1
      %p56 = scmp.ne.s32.totalorder %s51, %s53
      %p57 = scmp.eq.s32.totalorder %s17, 0
      %p58 = por %p56, %p57
      %p59 = scmp.ne.s32.totalorder %s51, %s53
      %p60 = scmp.eq.s32.totalorder %s22, 1
      %p61 = por %p59, %p60
      %p62 = scmp.ne.s32.totalorder %s53, %s54
      %p63 = scmp.eq.s32.totalorder %s22, 0
      %p64 = por %p62, %p63
      %p65 = scmp.ne.s32.totalorder %s53, %s54
      %p66 = scmp.eq.s32.totalorder %s23, 1
      %p67 = por %p65, %p66
      %p69 = scmp.ne.s32.totalorder %s54, %s68
      %p70 = scmp.eq.s32.totalorder %s23, 0
      %p71 = por %p69, %p70
      %s73 = sadd.s32 %s72, 1
      %p76 = scmp.eq.s32.totalorder %s17, 1
      %p77 = scmp.ne.s32.totalorder %s72, %s74
      %p78 = scmp.eq.s32.totalorder %s17, 0
      %p79 = por %p77, %p78
      %p80 = scmp.ne.s32.totalorder %s72, %s74
      %p81 = scmp.eq.s32.totalorder %s22, 1
      %p82 = por %p80, %p81
      %p83 = scmp.ne.s32.totalorder %s74, %s75
      %p84 = scmp.eq.s32.totalorder %s22, 0
      %p85 = por %p83, %p84
      %p86 = scmp.ne.s32.totalorder %s74, %s75
      %p87 = scmp.eq.s32.totalorder %s23, 1
      %p88 = por %p86, %p87
      %p90 = scmp.ne.s32.totalorder %s75, %s89
      %p91 = scmp.eq.s32.totalorder %s23, 0
      %p92 = por %p90, %p91
      %s94 = sadd.s32 %s93, 1
      %p97 = scmp.eq.s32.totalorder %s17, 1
      %p98 = scmp.ne.s32.totalorder %s93, %s95
      %p99 = scmp.eq.s32.totalorder %s17, 0
      %p100 = por %p98, %p99
      %p101 = scmp.ne.s32.totalorder %s93, %s95
      %p102 = scmp.eq.s32.totalorder %s22, 1
      %p103 = por %p101, %p102
      %p104 = scmp.ne.s32.totalorder %s95, %s96
      %p105 = scmp.eq.s32.totalorder %s22, 0
      %p106 = por %p104, %p105
      %p107 = scmp.ne.s32.totalorder %s95, %s96
      %p108 = scmp.eq.s32.totalorder %s23, 1
      %p109 = por %p107, %p108
      %p111 = scmp.ne.s32.totalorder %s96, %s110
      %p112 = scmp.eq.s32.totalorder %s23, 0
      %p113 = por %p111, %p112
      %s114 = ssub.s32 %s17, %s24
      %p115 = scmp.eq.s32.totalorder %s114, 0
      %s117 = sadd.s32 %s116, 1
      %s118 = scalar_select %p115, %s116, %s117
      %p121 = pneg %p115
      %p122 = scmp.eq.s32.totalorder %s17, 1
      %p123 = por %p121, %p122
      %p124 = scmp.ne.s32.totalorder %s116, %s119
      %p125 = scmp.eq.s32.totalorder %s17, 0
      %p126 = por %p124, %p125
      %p127 = scmp.ne.s32.totalorder %s116, %s119
      %p128 = scmp.eq.s32.totalorder %s22, 1
      %p129 = por %p127, %p128
      %p130 = scmp.ne.s32.totalorder %s119, %s120
      %p131 = scmp.eq.s32.totalorder %s22, 0
      %p132 = por %p130, %p131
      %p133 = scmp.ne.s32.totalorder %s119, %s120
      %p134 = scmp.eq.s32.totalorder %s23, 1
      %p135 = por %p133, %p134
      %p137 = scmp.ne.s32.totalorder %s120, %s136
      %p138 = scmp.eq.s32.totalorder %s23, 0
      %p139 = por %p137, %p138
      %p140 = scmp.le.s32.totalorder 1, %s17
      %p141 = scmp.lt.s32.totalorder %s17, 3
      %p142 = pnand %p140, %p141
      %p143 = pneg %p142
      // Predicated region
      $region9: #{tpu_custom_call.1} parent=5 // pred_check
        _
      $region10: #{tpu_custom_call.1} parent=5 // pred_check_branch
        %145 = sbr.rel (%p142) target = $region12
      $region11: #{tpu_custom_call.1} parent=5 // pred_region
        %s146 = ssub.s32 %s17, 1
        // Predicated region
        $region13: #{tpu_custom_call.1} parent=11 // pred_check
          %p147 = pneg %p64
        $region14: #{tpu_custom_call.1} parent=11 // pred_check_branch
          %149 = sbr.rel (%p147) target = $region16
        $region15: #{tpu_custom_call.1} parent=11 // pred_region
          %151 = vsyncadd [#allocation6], 0
          %s152 = sshll.u32 %s1, 4
          %s153 = int_to_ptr.hbm [resolvable:$true] %s152
          %s154 = sshll.u32 [#allocation5], 4
          %s155 = int_to_ptr.vmem [resolvable:$true] %s154
          %160 = dma.hbm_to_vmem [thread:$0]  %s153, 1024, %s155, [#allocation6], 64, 64, 4
        $region16: #{tpu_custom_call.1} parent=11 // pred_fallthru
          _
        // Predicated region
        $region17: #{tpu_custom_call.1} parent=11 // pred_check
          %p161 = pneg %p85
        $region18: #{tpu_custom_call.1} parent=11 // pred_check_branch
          %163 = sbr.rel (%p161) target = $region20
        $region19: #{tpu_custom_call.1} parent=11 // pred_region
          _
        $region20: #{tpu_custom_call.1} parent=11 // pred_fallthru
          _
        // Predicated region
        $region21: #{tpu_custom_call.1} parent=11 // pred_check
          %p164 = pneg %p106
        $region22: #{tpu_custom_call.1} parent=11 // pred_check_branch
          %166 = sbr.rel (%p164) target = $region24
        $region23: #{tpu_custom_call.1} parent=11 // pred_region
          _
        $region24: #{tpu_custom_call.1} parent=11 // pred_fallthru
          _
      $region12: #{tpu_custom_call.1} parent=5 // pred_fallthru
        _
      %p167 = scmp.lt.s32.totalorder %s17, 2
      // Predicated region
      $region25: #{tpu_custom_call.1} parent=5 // pred_check
        %p168 = pneg %p167
      $region26: #{tpu_custom_call.1} parent=5 // pred_check_branch
        %170 = sbr.rel (%p168) target = $region28
      $region27: #{tpu_custom_call.1} parent=5 // pred_region
        // Predicated region
        $region29: #{tpu_custom_call.1} parent=27 // pred_check
          %p171 = pneg %p37
        $region30: #{tpu_custom_call.1} parent=27 // pred_check_branch
          %173 = sbr.rel (%p171) target = $region32
        $region31: #{tpu_custom_call.1} parent=27 // pred_region
          #allocation9 [shape = 'u32[6]{0}', space=smem, size = 0x18, scoped, tag = 'DMA stride descriptor']
          %s174 = sand.u32 %s27, 1
          %s175 = scalar_lea.sflag [#allocation3], %s174
          %s176 = sand.u32 %s27, 1
          %s177 = smul.addr %s176, 128
          %s178 = scalar_lea.vmem [#allocation2], %s177
          %s179 = smul.u32 2, %s17
          %181 = vsyncadd %s175, 0
          %s182 = smul.addr %s179, 4
          %s183 = scalar_lea.hbm %s0, %s182
          %s185 = sshll.u32 1, 14
          %s186 = sxor.u32 4294967295, %s185
          %s188 = sld [smem:[#allocation0]]
          %s189 = sadd.s32 2, %s188
          %s191 = sshll.u32 7, 26
          %s192 = sxor.u32 4294967295, %s191
          %s193 = sand.u32 0, %s192
          %s194 = sshll.u32 %s189, 26
          %s195 = sor.u32 %s193, %s194
          %s196 = sshll.u32 %s183, 4
          %s197 = int_to_ptr.hbm [resolvable:$true] %s196
          %s198 = sshll.u32 %s178, 4
          %s199 = int_to_ptr.vmem [resolvable:$true] %s198
          %205 = sst [smem:[#allocation9]] 256
          %s206 = scalar_lea.smem [#allocation9], 1
          %207 = sst [smem:[%s206]] 128
          %s208 = scalar_lea.smem [#allocation9], 2
          %209 = sst [smem:[%s208]] 2
          %s210 = scalar_lea.smem [#allocation9], 3
          %211 = sst [smem:[%s210]] 64
          %s212 = scalar_lea.smem [#allocation9], 4
          %213 = sst [smem:[%s212]] 64
          %s214 = scalar_lea.smem [#allocation9], 5
          %215 = sst [smem:[%s214]] 4
          %217 = dma.general %s197, 2048, %s199, %s175, [#allocation8], [#allocation9], %s195, 0
        $region32: #{tpu_custom_call.1} parent=27 // pred_fallthru
          _
      $region28: #{tpu_custom_call.1} parent=5 // pred_fallthru
        _
      %p218 = scmp.le.s32.totalorder 1, %s17
      %p219 = scmp.lt.s32.totalorder %s17, 3
      %p220 = pnand %p218, %p219
      %p221 = pneg %p220
      // Predicated region
      $region33: #{tpu_custom_call.1} parent=5 // pred_check
        _
      $region34: #{tpu_custom_call.1} parent=5 // pred_check_branch
        %223 = sbr.rel (%p220) target = $region36
      $region35: #{tpu_custom_call.1} parent=5 // pred_region
        %s224 = ssub.s32 %s17, 1
        %s225 = sand.u32 %s30, 1
        %s226 = scalar_lea.sflag [#allocation3], %s225
        %s227 = sand.u32 %s30, 1
        %s228 = smul.addr %s227, 128
        %s229 = scalar_lea.vmem [#allocation2], %s228
        // Predicated region
        $region37: #{tpu_custom_call.1} parent=35 // pred_check
          %p230 = pneg %p43
        $region38: #{tpu_custom_call.1} parent=35 // pred_check_branch
          %232 = sbr.rel (%p230) target = $region40
        $region39: #{tpu_custom_call.1} parent=35 // pred_region
          %234 = dma.done %s226, 2048
        $region40: #{tpu_custom_call.1} parent=35 // pred_fallthru
          _
        // Predicated region
        $region41: #{tpu_custom_call.1} parent=35 // pred_check
          %p235 = pneg %p64
        $region42: #{tpu_custom_call.1} parent=35 // pred_check_branch
          %237 = sbr.rel (%p235) target = $region44
        $region43: #{tpu_custom_call.1} parent=35 // pred_region
          %239 = dma.done [#allocation6], 1024
        $region44: #{tpu_custom_call.1} parent=35 // pred_fallthru
          _
        %s240 = sand.u32 %s30, 1
        %s241 = scalar_lea.sflag [#allocation3], %s240
        %s242 = sand.u32 %s30, 1
        %s243 = smul.addr %s242, 128
        %s244 = scalar_lea.vmem [#allocation2], %s243
        %p245 = pneg %p43
        %p246 = pneg %p40
        %p247 = pneg %p64
        %p248 = pneg %p61
        %p249 = pneg %p85
        %p250 = pneg %p82
        %p251 = pneg %p106
        %p252 = pneg %p103
        %p253 = pneg %p132
        %p254 = pneg %p129
        %s255 = sand.u32 %s119, 1
        %s256 = scalar_lea.sflag [#allocation4], %s255
        %s257 = sand.u32 %s119, 1
        %s258 = smul.addr %s257, 128
        %s259 = scalar_lea.vmem [#allocation7], %s258
        %s260 = smul.u32 2, %s22
        %s261 = smul.u32 2, %s22
        %v262 = vld [vmem:[%s229] sm:$0xf]
        %v263 = vld [vmem:[%s229 + $0x4] sm:$0xf]
        %v264 = vld [vmem:[%s229 + $0x8] sm:$0xf]
        %v265 = vld [vmem:[%s229 + $0xc] sm:$0xf]
        %v266 = vld [vmem:[%s229 + $0x10] sm:$0xf]
        %v267 = vld [vmem:[%s229 + $0x14] sm:$0xf]
        %v268 = vld [vmem:[%s229 + $0x18] sm:$0xf]
        %v269 = vld [vmem:[%s229 + $0x1c] sm:$0xf]
        %v270 = vld [vmem:[%s229 + $0x20] sm:$0xf]
        %v271 = vld [vmem:[%s229 + $0x24] sm:$0xf]
        %v272 = vld [vmem:[%s229 + $0x28] sm:$0xf]
        %v273 = vld [vmem:[%s229 + $0x2c] sm:$0xf]
        %v274 = vld [vmem:[%s229 + $0x30] sm:$0xf]
        %v275 = vld [vmem:[%s229 + $0x34] sm:$0xf]
        %v276 = vld [vmem:[%s229 + $0x38] sm:$0xf]
        %v277 = vld [vmem:[%s229 + $0x3c] sm:$0xf]
        %v278 = vld [vmem:[%s229 + $0x40] sm:$0xf]
        %v279 = vld [vmem:[%s229 + $0x44] sm:$0xf]
        %v280 = vld [vmem:[%s229 + $0x48] sm:$0xf]
        %v281 = vld [vmem:[%s229 + $0x4c] sm:$0xf]
        %v282 = vld [vmem:[%s229 + $0x50] sm:$0xf]
        %v283 = vld [vmem:[%s229 + $0x54] sm:$0xf]
        %v284 = vld [vmem:[%s229 + $0x58] sm:$0xf]
        %v285 = vld [vmem:[%s229 + $0x5c] sm:$0xf]
        %v286 = vld [vmem:[%s229 + $0x60] sm:$0xf]
        %v287 = vld [vmem:[%s229 + $0x64] sm:$0xf]
        %v288 = vld [vmem:[%s229 + $0x68] sm:$0xf]
        %v289 = vld [vmem:[%s229 + $0x6c] sm:$0xf]
        %v290 = vld [vmem:[%s229 + $0x70] sm:$0xf]
        %v291 = vld [vmem:[%s229 + $0x74] sm:$0xf]
        %v292 = vld [vmem:[%s229 + $0x78] sm:$0xf]
        %v293 = vld [vmem:[%s229 + $0x7c] sm:$0xf]
        %v294 = vld [vmem:[#allocation5] sm:$0xf]
        %v295 = vld [vmem:[#allocation5 + $0x4] sm:$0xf]
        %v296 = vld [vmem:[#allocation5 + $0x8] sm:$0xf]
        %v297 = vld [vmem:[#allocation5 + $0xc] sm:$0xf]
        %v298 = vld [vmem:[#allocation5 + $0x10] sm:$0xf]
        %v299 = vld [vmem:[#allocation5 + $0x14] sm:$0xf]
        %v300 = vld [vmem:[#allocation5 + $0x18] sm:$0xf]
        %v301 = vld [vmem:[#allocation5 + $0x1c] sm:$0xf]
        %v302 = vld [vmem:[#allocation5 + $0x20] sm:$0xf]
        %v303 = vld [vmem:[#allocation5 + $0x24] sm:$0xf]
        %v304 = vld [vmem:[#allocation5 + $0x28] sm:$0xf]
        %v305 = vld [vmem:[#allocation5 + $0x2c] sm:$0xf]
        %v306 = vld [vmem:[#allocation5 + $0x30] sm:$0xf]
        %v307 = vld [vmem:[#allocation5 + $0x34] sm:$0xf]
        %v308 = vld [vmem:[#allocation5 + $0x38] sm:$0xf]
        %v309 = vld [vmem:[#allocation5 + $0x3c] sm:$0xf]
        %v342 = vunpack.c.l.b16 %v262
        %v343 = vunpack.c.l.b16 %v263
        %v344 = vunpack.c.l.b16 %v264
        %v345 = vunpack.c.l.b16 %v265
        %v346 = vunpack.c.l.b16 %v266
        %v347 = vunpack.c.l.b16 %v267
        %v348 = vunpack.c.l.b16 %v268
        %v349 = vunpack.c.l.b16 %v269
        %v350 = vunpack.c.l.b16 %v270
        %v351 = vunpack.c.l.b16 %v271
        %v352 = vunpack.c.l.b16 %v272
        %v353 = vunpack.c.l.b16 %v273
        %v354 = vunpack.c.l.b16 %v274
        %v355 = vunpack.c.l.b16 %v275
        %v356 = vunpack.c.l.b16 %v276
        %v357 = vunpack.c.l.b16 %v277
        %v358 = vunpack.c.l.b16 %v278
        %v359 = vunpack.c.l.b16 %v279
        %v360 = vunpack.c.l.b16 %v280
        %v361 = vunpack.c.l.b16 %v281
        %v362 = vunpack.c.l.b16 %v282
        %v363 = vunpack.c.l.b16 %v283
        %v364 = vunpack.c.l.b16 %v284
        %v365 = vunpack.c.l.b16 %v285
        %v366 = vunpack.c.l.b16 %v286
        %v367 = vunpack.c.l.b16 %v287
        %v368 = vunpack.c.l.b16 %v288
        %v369 = vunpack.c.l.b16 %v289
        %v370 = vunpack.c.l.b16 %v290
        %v371 = vunpack.c.l.b16 %v291
        %v372 = vunpack.c.l.b16 %v292
        %v373 = vunpack.c.l.b16 %v293
        %v374 = vpack.c.b16 %v343, %v342
        %v375 = vpack.c.b16 %v345, %v344
        %v376 = vpack.c.b16 %v347, %v346
        %v377 = vpack.c.b16 %v349, %v348
        %v378 = vpack.c.b16 %v351, %v350
        %v379 = vpack.c.b16 %v353, %v352
        %v380 = vpack.c.b16 %v355, %v354
        %v381 = vpack.c.b16 %v357, %v356
        %v382 = vpack.c.b16 %v359, %v358
        %v383 = vpack.c.b16 %v361, %v360
        %v384 = vpack.c.b16 %v363, %v362
        %v385 = vpack.c.b16 %v365, %v364
        %v386 = vpack.c.b16 %v367, %v366
        %v387 = vpack.c.b16 %v369, %v368
        %v388 = vpack.c.b16 %v371, %v370
        %v389 = vpack.c.b16 %v373, %v372
        %v422 = vunpack.c.l.b16 %v294
        %v423 = vunpack.c.l.b16 %v295
        %v424 = vunpack.c.l.b16 %v296
        %v425 = vunpack.c.l.b16 %v297
        %v426 = vunpack.c.l.b16 %v298
        %v427 = vunpack.c.l.b16 %v299
        %v428 = vunpack.c.l.b16 %v300
        %v429 = vunpack.c.l.b16 %v301
        %v430 = vunpack.c.l.b16 %v302
        %v431 = vunpack.c.l.b16 %v303
        %v432 = vunpack.c.l.b16 %v304
        %v433 = vunpack.c.l.b16 %v305
        %v434 = vunpack.c.l.b16 %v306
        %v435 = vunpack.c.l.b16 %v307
        %v436 = vunpack.c.l.b16 %v308
        %v437 = vunpack.c.l.b16 %v309
        %v438 = vpack.c.b16 %v423, %v422
        %v439 = vpack.c.b16 %v425, %v424
        %v440 = vpack.c.b16 %v427, %v426
        %v441 = vpack.c.b16 %v429, %v428
        %v442 = vpack.c.b16 %v431, %v430
        %v443 = vpack.c.b16 %v433, %v432
        %v444 = vpack.c.b16 %v435, %v434
        %v445 = vpack.c.b16 %v437, %v436
        %454 = vmatpush.bf16.msra.mxu0 %v445
        %455 = vmatpush.bf16.msra.mxu0 %v444
        %456 = vmatpush.bf16.msra.mxu0 %v443
        %457 = vmatpush.bf16.msra.mxu0 %v442
        %458 = vmatpush.bf16.msra.mxu0 %v441
        %459 = vmatpush.bf16.msra.mxu0 %v440
        %460 = vmatpush.bf16.msra.mxu0 %v439
        %461 = vmatpush.bf16.msra.mxu0 %v438
        %462 = vmatmul.bf16.gmra.mxu0 %v374
        %v463 = vpop.f32.mrf.mxu0
        %v464 = vadd.f32 0.0, %v463
        %v465 = vpop.f32.mrf.mxu0
        %v466 = vadd.f32 0.0, %v465
        %467 = vmatmul.bf16.gmra.mxu0 %v375
        %v468 = vpop.f32.mrf.mxu0
        %v469 = vadd.f32 0.0, %v468
        %v470 = vpop.f32.mrf.mxu0
        %v471 = vadd.f32 0.0, %v470
        %472 = vmatmul.bf16.gmra.mxu0 %v376
        %v473 = vpop.f32.mrf.mxu0
        %v474 = vadd.f32 0.0, %v473
        %v475 = vpop.f32.mrf.mxu0
        %v476 = vadd.f32 0.0, %v475
        %477 = vmatmul.bf16.gmra.mxu0 %v377
        %v478 = vpop.f32.mrf.mxu0
        %v479 = vadd.f32 0.0, %v478
        %v480 = vpop.f32.mrf.mxu0
        %v481 = vadd.f32 0.0, %v480
        %482 = vmatmul.bf16.gmra.mxu0 %v378
        %v483 = vpop.f32.mrf.mxu0
        %v484 = vadd.f32 0.0, %v483
        %v485 = vpop.f32.mrf.mxu0
        %v486 = vadd.f32 0.0, %v485
        %487 = vmatmul.bf16.gmra.mxu0 %v379
        %v488 = vpop.f32.mrf.mxu0
        %v489 = vadd.f32 0.0, %v488
        %v490 = vpop.f32.mrf.mxu0
        %v491 = vadd.f32 0.0, %v490
        %492 = vmatmul.bf16.gmra.mxu0 %v380
        %v493 = vpop.f32.mrf.mxu0
        %v494 = vadd.f32 0.0, %v493
        %v495 = vpop.f32.mrf.mxu0
        %v496 = vadd.f32 0.0, %v495
        %497 = vmatmul.bf16.gmra.mxu0 %v381
        %v498 = vpop.f32.mrf.mxu0
        %v499 = vadd.f32 0.0, %v498
        %v500 = vpop.f32.mrf.mxu0
        %v501 = vadd.f32 0.0, %v500
        %502 = vmatmul.bf16.gmra.mxu0 %v382
        %v503 = vpop.f32.mrf.mxu0
        %v504 = vadd.f32 0.0, %v503
        %v505 = vpop.f32.mrf.mxu0
        %v506 = vadd.f32 0.0, %v505
        %507 = vmatmul.bf16.gmra.mxu0 %v383
        %v508 = vpop.f32.mrf.mxu0
        %v509 = vadd.f32 0.0, %v508
        %v510 = vpop.f32.mrf.mxu0
        %v511 = vadd.f32 0.0, %v510
        %512 = vmatmul.bf16.gmra.mxu0 %v384
        %v513 = vpop.f32.mrf.mxu0
        %v514 = vadd.f32 0.0, %v513
        %v515 = vpop.f32.mrf.mxu0
        %v516 = vadd.f32 0.0, %v515
        %517 = vmatmul.bf16.gmra.mxu0 %v385
        %v518 = vpop.f32.mrf.mxu0
        %v519 = vadd.f32 0.0, %v518
        %v520 = vpop.f32.mrf.mxu0
        %v521 = vadd.f32 0.0, %v520
        %522 = vmatmul.bf16.gmra.mxu0 %v386
        %v523 = vpop.f32.mrf.mxu0
        %v524 = vadd.f32 0.0, %v523
        %v525 = vpop.f32.mrf.mxu0
        %v526 = vadd.f32 0.0, %v525
        %527 = vmatmul.bf16.gmra.mxu0 %v387
        %v528 = vpop.f32.mrf.mxu0
        %v529 = vadd.f32 0.0, %v528
        %v530 = vpop.f32.mrf.mxu0
        %v531 = vadd.f32 0.0, %v530
        %532 = vmatmul.bf16.gmra.mxu0 %v388
        %v533 = vpop.f32.mrf.mxu0
        %v534 = vadd.f32 0.0, %v533
        %v535 = vpop.f32.mrf.mxu0
        %v536 = vadd.f32 0.0, %v535
        %537 = vmatmul.bf16.gmra.mxu0 %v389
        %v538 = vpop.f32.mrf.mxu0
        %v539 = vadd.f32 0.0, %v538
        %v540 = vpop.f32.mrf.mxu0
        %v541 = vadd.f32 0.0, %v540
        %542 = vdwg.mxu0
        %v543 = vld [vmem:[%s2] sm:$0x1]
        %v545 = vperm.slane %v543, 0
        %v547 = vmul.f32 %v464, %v545
        %v548 = vmul.f32 %v466, %v545
        %v549 = vmul.f32 %v469, %v545
        %v550 = vmul.f32 %v471, %v545
        %v551 = vmul.f32 %v474, %v545
        %v552 = vmul.f32 %v476, %v545
        %v553 = vmul.f32 %v479, %v545
        %v554 = vmul.f32 %v481, %v545
        %v555 = vmul.f32 %v484, %v545
        %v556 = vmul.f32 %v486, %v545
        %v557 = vmul.f32 %v489, %v545
        %v558 = vmul.f32 %v491, %v545
        %v559 = vmul.f32 %v494, %v545
        %v560 = vmul.f32 %v496, %v545
        %v561 = vmul.f32 %v499, %v545
        %v562 = vmul.f32 %v501, %v545
        %v563 = vmul.f32 %v504, %v545
        %v564 = vmul.f32 %v506, %v545
        %v565 = vmul.f32 %v509, %v545
        %v566 = vmul.f32 %v511, %v545
        %v567 = vmul.f32 %v514, %v545
        %v568 = vmul.f32 %v516, %v545
        %v569 = vmul.f32 %v519, %v545
        %v570 = vmul.f32 %v521, %v545
        %v571 = vmul.f32 %v524, %v545
        %v572 = vmul.f32 %v526, %v545
        %v573 = vmul.f32 %v529, %v545
        %v574 = vmul.f32 %v531, %v545
        %v575 = vmul.f32 %v534, %v545
        %v576 = vmul.f32 %v536, %v545
        %v577 = vmul.f32 %v539, %v545
        %v578 = vmul.f32 %v541, %v545
        %v579 = vld [vmem:[%s3] sm:$0x1]
        %v581 = vperm.slane %v579, 0
        %v583 = vadd.f32 %v547, %v581
        %v584 = vadd.f32 %v548, %v581
        %v585 = vadd.f32 %v549, %v581
        %v586 = vadd.f32 %v550, %v581
        %v587 = vadd.f32 %v551, %v581
        %v588 = vadd.f32 %v552, %v581
        %v589 = vadd.f32 %v553, %v581
        %v590 = vadd.f32 %v554, %v581
        %v591 = vadd.f32 %v555, %v581
        %v592 = vadd.f32 %v556, %v581
        %v593 = vadd.f32 %v557, %v581
        %v594 = vadd.f32 %v558, %v581
        %v595 = vadd.f32 %v559, %v581
        %v596 = vadd.f32 %v560, %v581
        %v597 = vadd.f32 %v561, %v581
        %v598 = vadd.f32 %v562, %v581
        %v599 = vadd.f32 %v563, %v581
        %v600 = vadd.f32 %v564, %v581
        %v601 = vadd.f32 %v565, %v581
        %v602 = vadd.f32 %v566, %v581
        %v603 = vadd.f32 %v567, %v581
        %v604 = vadd.f32 %v568, %v581
        %v605 = vadd.f32 %v569, %v581
        %v606 = vadd.f32 %v570, %v581
        %v607 = vadd.f32 %v571, %v581
        %v608 = vadd.f32 %v572, %v581
        %v609 = vadd.f32 %v573, %v581
        %v610 = vadd.f32 %v574, %v581
        %v611 = vadd.f32 %v575, %v581
        %v612 = vadd.f32 %v576, %v581
        %v613 = vadd.f32 %v577, %v581
        %v614 = vadd.f32 %v578, %v581
        %v615 = vpack.c.bf16 %v583, %v583
        %v616 = vpack.c.bf16 %v584, %v584
        %v617 = vpack.c.bf16 %v585, %v585
        %v618 = vpack.c.bf16 %v586, %v586
        %v619 = vpack.c.bf16 %v587, %v587
        %v620 = vpack.c.bf16 %v588, %v588
        %v621 = vpack.c.bf16 %v589, %v589
        %v622 = vpack.c.bf16 %v590, %v590
        %v623 = vpack.c.bf16 %v591, %v591
        %v624 = vpack.c.bf16 %v592, %v592
        %v625 = vpack.c.bf16 %v593, %v593
        %v626 = vpack.c.bf16 %v594, %v594
        %v627 = vpack.c.bf16 %v595, %v595
        %v628 = vpack.c.bf16 %v596, %v596
        %v629 = vpack.c.bf16 %v597, %v597
        %v630 = vpack.c.bf16 %v598, %v598
        %v631 = vpack.c.bf16 %v599, %v599
        %v632 = vpack.c.bf16 %v600, %v600
        %v633 = vpack.c.bf16 %v601, %v601
        %v634 = vpack.c.bf16 %v602, %v602
        %v635 = vpack.c.bf16 %v603, %v603
        %v636 = vpack.c.bf16 %v604, %v604
        %v637 = vpack.c.bf16 %v605, %v605
        %v638 = vpack.c.bf16 %v606, %v606
        %v639 = vpack.c.bf16 %v607, %v607
        %v640 = vpack.c.bf16 %v608, %v608
        %v641 = vpack.c.bf16 %v609, %v609
        %v642 = vpack.c.bf16 %v610, %v610
        %v643 = vpack.c.bf16 %v611, %v611
        %v644 = vpack.c.bf16 %v612, %v612
        %v645 = vpack.c.bf16 %v613, %v613
        %v646 = vpack.c.bf16 %v614, %v614
        %647 = vst [vmem:[%s259] sm:$0xf] %v615
        %648 = vst [vmem:[%s259 + $0x4] sm:$0xf] %v616
        %649 = vst [vmem:[%s259 + $0x8] sm:$0xf] %v617
        %650 = vst [vmem:[%s259 + $0xc] sm:$0xf] %v618
        %651 = vst [vmem:[%s259 + $0x10] sm:$0xf] %v619
        %652 = vst [vmem:[%s259 + $0x14] sm:$0xf] %v620
        %653 = vst [vmem:[%s259 + $0x18] sm:$0xf] %v621
        %654 = vst [vmem:[%s259 + $0x1c] sm:$0xf] %v622
        %655 = vst [vmem:[%s259 + $0x20] sm:$0xf] %v623
        %656 = vst [vmem:[%s259 + $0x24] sm:$0xf] %v624
        %657 = vst [vmem:[%s259 + $0x28] sm:$0xf] %v625
        %658 = vst [vmem:[%s259 + $0x2c] sm:$0xf] %v626
        %659 = vst [vmem:[%s259 + $0x30] sm:$0xf] %v627
        %660 = vst [vmem:[%s259 + $0x34] sm:$0xf] %v628
        %661 = vst [vmem:[%s259 + $0x38] sm:$0xf] %v629
        %662 = vst [vmem:[%s259 + $0x3c] sm:$0xf] %v630
        %663 = vst [vmem:[%s259 + $0x40] sm:$0xf] %v631
        %664 = vst [vmem:[%s259 + $0x44] sm:$0xf] %v632
        %665 = vst [vmem:[%s259 + $0x48] sm:$0xf] %v633
        %666 = vst [vmem:[%s259 + $0x4c] sm:$0xf] %v634
        %667 = vst [vmem:[%s259 + $0x50] sm:$0xf] %v635
        %668 = vst [vmem:[%s259 + $0x54] sm:$0xf] %v636
        %669 = vst [vmem:[%s259 + $0x58] sm:$0xf] %v637
        %670 = vst [vmem:[%s259 + $0x5c] sm:$0xf] %v638
        %671 = vst [vmem:[%s259 + $0x60] sm:$0xf] %v639
        %672 = vst [vmem:[%s259 + $0x64] sm:$0xf] %v640
        %673 = vst [vmem:[%s259 + $0x68] sm:$0xf] %v641
        %674 = vst [vmem:[%s259 + $0x6c] sm:$0xf] %v642
        %675 = vst [vmem:[%s259 + $0x70] sm:$0xf] %v643
        %676 = vst [vmem:[%s259 + $0x74] sm:$0xf] %v644
        %677 = vst [vmem:[%s259 + $0x78] sm:$0xf] %v645
        %678 = vst [vmem:[%s259 + $0x7c] sm:$0xf] %v646
        %s679 = sand.u32 %s119, 1
        %s680 = scalar_lea.sflag [#allocation4], %s679
        %s681 = sand.u32 %s119, 1
        %s682 = smul.addr %s681, 128
        %s683 = scalar_lea.vmem [#allocation7], %s682
        // Predicated region
        $region45: #{tpu_custom_call.1} parent=35 // pred_check
          %p684 = pneg %p129
        $region46: #{tpu_custom_call.1} parent=35 // pred_check_branch
          %686 = sbr.rel (%p684) target = $region48
        $region47: #{tpu_custom_call.1} parent=35 // pred_region
          #allocation11 [shape = 'u32[6]{0}', space=smem, size = 0x18, scoped, tag = 'DMA stride descriptor']
          %s687 = smul.u32 2, %s22
          %689 = vsyncadd %s680, 0
          %s690 = smul.addr %s687, 4
          %s691 = scalar_lea.hbm %s4, %s690
          %s693 = sshll.u32 1, 14
          %s694 = sxor.u32 4294967295, %s693
          %s697 = sshll.u32 7, 18
          %s698 = sxor.u32 4294967295, %s697
          %s699 = sand.u32 0, %s698
          %s701 = sor.u32 %s699, 0
          %s702 = sshll.u32 %s683, 4
          %s703 = int_to_ptr.vmem [resolvable:$true] %s702
          %s704 = sshll.u32 %s691, 4
          %s705 = int_to_ptr.hbm [resolvable:$true] %s704
          %711 = sst [smem:[#allocation11]] 128
          %s712 = scalar_lea.smem [#allocation11], 1
          %713 = sst [smem:[%s712]] 256
          %s714 = scalar_lea.smem [#allocation11], 2
          %715 = sst [smem:[%s714]] 2
          %s716 = scalar_lea.smem [#allocation11], 3
          %717 = sst [smem:[%s716]] 64
          %s718 = scalar_lea.smem [#allocation11], 4
          %719 = sst [smem:[%s718]] 64
          %s720 = scalar_lea.smem [#allocation11], 5
          %721 = sst [smem:[%s720]] 4
          %723 = dma.general %s703, 2048, %s705, %s680, [#allocation10], [#allocation11], %s701, 0
        $region48: #{tpu_custom_call.1} parent=35 // pred_fallthru
          _
      $region36: #{tpu_custom_call.1} parent=5 // pred_fallthru
        _
      %p724 = scmp.le.s32.totalorder 2, %s17
      // Predicated region
      $region49: #{tpu_custom_call.1} parent=5 // pred_check
        %p725 = pneg %p724
      $region50: #{tpu_custom_call.1} parent=5 // pred_check_branch
        %727 = sbr.rel (%p725) target = $region52
      $region51: #{tpu_custom_call.1} parent=5 // pred_region
        %s728 = ssub.s32 %s17, 2
        // Predicated region
        $region53: #{tpu_custom_call.1} parent=51 // pred_check
          %p729 = pneg %p135
        $region54: #{tpu_custom_call.1} parent=51 // pred_check_branch
          %731 = sbr.rel (%p729) target = $region56
        $region55: #{tpu_custom_call.1} parent=51 // pred_region
          %s732 = sand.u32 %s120, 1
          %s733 = scalar_lea.sflag [#allocation4], %s732
          %s734 = sand.u32 %s120, 1
          %s735 = smul.addr %s734, 128
          %s736 = scalar_lea.vmem [#allocation7], %s735
          %738 = dma.done %s733, 2048
        $region56: #{tpu_custom_call.1} parent=51 // pred_fallthru
          _
      $region52: #{tpu_custom_call.1} parent=5 // pred_fallthru
        _
    $region6: #{tpu_custom_call.1} parent=1 // loop_footer
      %s21 = sadd.s32 1, %s17
    $region7: #{tpu_custom_call.1} parent=1 // loop_footer_branch
      %16 = sbr.rel target = $region3
    $region8: #{tpu_custom_call.1} parent=1 // loop_exit
      _
    %739 = vsyncpa [#allocation3], 1
    %s740 = scalar_lea.sflag [#allocation3], 1
    %741 = vsyncpa %s740, 1
    %742 = vsyncpa [#allocation6], 1
    %743 = vsyncpa [#allocation4], 1
    %s744 = scalar_lea.sflag [#allocation4], 1
    %745 = vsyncpa %s744, 1

</llo_original>
